<compile_context>
chip_gen: v7x
topology: tpu7x:2x2x1
jax: 0.10.0
libtpu: 0.0.40
codegen_flags: <defaults>
</compile_context>

<pallas_src>
import functools

import jax
import jax.numpy as jnp
from jax.experimental import pallas as pl
from jax.experimental.pallas import tpu as pltpu


def _round_up(n, m):
    return ((n + m - 1) // m) * m


def fused_affine_kernel(x_ref, w_ref, b_ref, o_ref):
    # Single fused matmul + bias add; all operands resident in VMEM.
    o_ref[...] = (
        jnp.dot(x_ref[...], w_ref[...], preferred_element_type=jnp.float32)
        + b_ref[...]
    ).astype(o_ref.dtype)


def prepare_params(params):
    """One-time fold of the 3 affine layers into a single (W, b).

    params: (w1, b1, w2, b2, w3, b3), w_i: [in, out], b_i: [1, out]
    returns: (w_fused [obs_dim, act_dim], b_fused [1, act_dim])
    """
    w1, b1, w2, b2, w3, b3 = params
    hp = jax.lax.Precision.HIGHEST  # keep the fold robust vs the reference
    w_fused = jnp.dot(jnp.dot(w1, w2, precision=hp), w3, precision=hp)
    b_fused = jnp.dot(jnp.dot(b1, w2, precision=hp) + b2, w3, precision=hp) + b3
    return w_fused, b_fused


def _choose_batch_tile(batch, tb_max):
    # Multiple of 8, at most tb_max (v5e scoped-VMEM safe), at least 8, and
    # no larger than the (rounded-up) batch.  For large batches this targets
    # >= 8 grid steps so megacore sharding / double-buffering have work.
    tb = _round_up(pl.cdiv(batch, 8), 256)
    tb = max(8, min(tb, tb_max, _round_up(batch, 8)))
    return tb


@functools.partial(jax.jit, static_argnames=("tb_max",))
def policy_forward(x, fused_params, *, tb_max=4096):
    """Forward pass of the Policy MLP as one fused Pallas kernel.

    x:            [batch, obs_dim] float32
    fused_params: (w_fused [obs_dim, act_dim], b_fused [1, act_dim])
    """
    w_fused, b_fused = fused_params
    batch, obs_dim = x.shape
    act_dim = w_fused.shape[1]

    tb = _choose_batch_tile(batch, tb_max)
    grid = (pl.cdiv(batch, tb),)  # remainder-safe partial last block

    cost = pl.CostEstimate(
        flops=2 * batch * obs_dim * act_dim,
        transcendentals=0,
        bytes_accessed=4 * (batch * obs_dim + obs_dim * act_dim + act_dim
                            + batch * act_dim),
    )

    out = pl.pallas_call(
        fused_affine_kernel,
        out_shape=jax.ShapeDtypeStruct((batch, act_dim), jnp.float32),
        grid=grid,
        in_specs=[
            pl.BlockSpec((tb, obs_dim), lambda i: (i, 0)),        # x: tiled over batch
            pl.BlockSpec((obs_dim, act_dim), lambda i: (0, 0)),   # fused W: resident
            pl.BlockSpec((1, act_dim), lambda i: (0, 0)),         # fused b: resident
        ],
        out_specs=pl.BlockSpec((tb, act_dim), lambda i: (i, 0)),  # real cols only
        compiler_params=pltpu.CompilerParams(
            dimension_semantics=("parallel",),  # shards batch across TCs on v7x
        ),
        cost_estimate=cost,
    )(x, w_fused, b_fused)

    return out


def init_params(key, obs_dim, act_dim):
    """Deterministic init mimicking nn.Linear's U(-1/sqrt(fan_in), 1/sqrt(fan_in))."""
    dims = [(obs_dim, 50), (50, 30), (30, act_dim)]
    params = []
    keys = jax.random.split(key, 2 * len(dims))
    for i, (fan_in, fan_out) in enumerate(dims):
        bound = 1.0 / jnp.sqrt(fan_in)
        w = jax.random.uniform(keys[2 * i], (fan_in, fan_out), jnp.float32,
                               minval=-bound, maxval=bound)
        b = jax.random.uniform(keys[2 * i + 1], (1, fan_out), jnp.float32,
                               minval=-bound, maxval=bound)
        params += [w, b]
    return tuple(params)


def reference_forward(x, params):
    w1, b1, w2, b2, w3, b3 = params
    h = x @ w1 + b1
    h = h @ w2 + b2
    return h @ w3 + b3


if __name__ == "__main__":
    obs_dim, act_dim, batch = 16, 6, 8

    key = jax.random.PRNGKey(0)
    pkey, xkey = jax.random.split(key)
    params = init_params(pkey, obs_dim, act_dim)
    x = jax.random.normal(xkey, (batch, obs_dim), dtype=jnp.float32)

    # One-time parameter fold (outside the per-call path).
    fused_params = prepare_params(params)
    fused_params = jax.block_until_ready(fused_params)

    out = policy_forward(x, fused_params)
    out = jax.block_until_ready(out)

    ref = reference_forward(x, params)
    assert out.shape == (batch, act_dim)
    # Fusion changes rounding order slightly vs the reference (intentional).
    assert jnp.allclose(out, ref, atol=1e-4, rtol=1e-4), "mismatch vs JAX reference"

    print("KERNEL_OK")
</pallas_src>

<mosaic_0001>
module attributes {stable_mosaic.version = 11 : i64} {
  func.func @fused_affine_kernel(%arg0: i32, %arg1: memref<8x16xf32, #tpu.memory_space<vmem>>, %arg2: memref<16x6xf32, #tpu.memory_space<vmem>>, %arg3: memref<1x6xf32, #tpu.memory_space<vmem>>, %arg4: memref<8x6xf32, #tpu.memory_space<vmem>>) attributes {dimension_semantics = [#tpu.dimension_semantics<parallel>], iteration_bounds = array<i64: 1>, scalar_prefetch = 0 : i64, scratch_operands = 0 : i64, tpu.core_type = #tpu.core_type<tc>, window_params = [{transform_indices = @transform_0, window_bounds = array<i64: 8, 16>}, {pipeline_mode = #tpu.pipeline_mode<synchronous>, transform_indices = @transform_1, window_bounds = array<i64: 16, 6>}, {pipeline_mode = #tpu.pipeline_mode<synchronous>, transform_indices = @transform_2, window_bounds = array<i64: 1, 6>}, {transform_indices = @transform_3, window_bounds = array<i64: 8, 6>}]} {
    %c0 = arith.constant 0 : index
    %c0_0 = arith.constant 0 : index
    %0 = vector.load %arg1[%c0, %c0_0] : memref<8x16xf32, #tpu.memory_space<vmem>>, vector<8x16xf32>
    %c0_1 = arith.constant 0 : index
    %c0_2 = arith.constant 0 : index
    %1 = vector.load %arg2[%c0_1, %c0_2] : memref<16x6xf32, #tpu.memory_space<vmem>>, vector<16x6xf32>
    %cst = arith.constant dense<0.000000e+00> : vector<8x6xf32>
    %2 = tpu.matmul %0, %1, %cst {dimension_numbers = #tpu.dot_dimension_numbers<[1], [0], [0], [1], [0, 0, 1, 1], [], []>} : vector<8x16xf32>, vector<16x6xf32>, vector<8x6xf32> -> vector<8x6xf32>
    %c0_3 = arith.constant 0 : index
    %c0_4 = arith.constant 0 : index
    %3 = vector.load %arg3[%c0_3, %c0_4] : memref<1x6xf32, #tpu.memory_space<vmem>>, vector<1x6xf32>
    %4 = vector.broadcast %3 : vector<1x6xf32> to vector<8x6xf32>
    %5 = arith.addf %2, %4 : vector<8x6xf32>
    %c0_5 = arith.constant 0 : index
    %c0_6 = arith.constant 0 : index
    %6 = vector.load %arg4[%c0_5, %c0_6] : memref<8x6xf32, #tpu.memory_space<vmem>>, vector<8x6xf32>
    tpu.vector_store %arg4[%c0_5, %c0_6], %5 {strides = array<i32>} : memref<8x6xf32, #tpu.memory_space<vmem>>, vector<8x6xf32>,
    return
  }
  func.func @transform_0(%arg0: i32) -> (i32, i32) {
    %c0_i32 = arith.constant 0 : i32
    %c0_i32_0 = arith.constant 0 : i32
    return %arg0, %c0_i32 : i32, i32
  }
  func.func @transform_1(%arg0: i32) -> (i32, i32) {
    %c0_i32 = arith.constant 0 : i32
    %c0_i32_0 = arith.constant 0 : i32
    %c0_i32_1 = arith.constant 0 : i32
    return %c0_i32, %c0_i32_0 : i32, i32
  }
  func.func @transform_2(%arg0: i32) -> (i32, i32) {
    %c0_i32 = arith.constant 0 : i32
    %c0_i32_0 = arith.constant 0 : i32
    %c0_i32_1 = arith.constant 0 : i32
    return %c0_i32, %c0_i32_0 : i32, i32
  }
  func.func @transform_3(%arg0: i32) -> (i32, i32) {
    %c0_i32 = arith.constant 0 : i32
    %c0_i32_0 = arith.constant 0 : i32
    return %arg0, %c0_i32 : i32, i32
  }
}

</mosaic_0001>

<llo_original>
// kernel: policy_forward.1
$region0: #{policy_forward.1}
  #allocation0 [shape = 'u32[]', space=smem, size = 0x4, offset = 0x4, fixed_abs, tag = 'smem constant byte address 0x4 - core index']
  #allocation1 [shape = 'u32[144,128]{1,0:T(1,128)}', space=vmem, size = 0x12000, scoped, tag = 'internal scratch']
  %s0 = inlined_call_operand.vmem [shape: f32[8,16], index: 0, kind: input, shape index: {}]
  %s1 = inlined_call_operand.vmem [shape: f32[16,6], index: 1, kind: input, shape index: {}]
  %s2 = inlined_call_operand.vmem [shape: f32[1,6], index: 2, kind: input, shape index: {}]
  %s3 = inlined_call_operand.hbm [shape: f32[8,6], index: 3, kind: output, shape index: {}]
  %s4 = sld [smem:[#allocation0]]
  $region22: #{policy_forward.1} parent=0
    _
  %s6 = ssub.s32 1, %s4
  %s7 = scalar_select 0, %s6, %s4
  $region1: #{policy_forward.1} parent=0
    #allocation2 [shape = 'u8[4096]{0}', space=vmem, size = 0x1000, scoped, tag = 'output window, operand 0, single buffered']
    #allocation3 [shape = 's32[1]{0}', space=sflag, size = 0x4, scoped, tag = 'scoped memory for policy_forward.1']
    %8 = vsyncpa [#allocation3], 0
    // Predicated region
    $region2: #{policy_forward.1} parent=1 // pred_check
      _
    $region3: #{policy_forward.1} parent=1 // pred_check_branch
      %10 = sbr.rel (0) target = $region5
    $region4: #{policy_forward.1} parent=1 // pred_region
      _
    $region5: #{policy_forward.1} parent=1 // pred_fallthru
      _
    // Predicated region
    $region6: #{policy_forward.1} parent=1 // pred_check
      _
    $region7: #{policy_forward.1} parent=1 // pred_check_branch
      %12 = sbr.rel (0) target = $region9
    $region8: #{policy_forward.1} parent=1 // pred_region
      _
    $region9: #{policy_forward.1} parent=1 // pred_fallthru
      _
    // Predicated region
    $region10: #{policy_forward.1} parent=1 // pred_check
      _
    $region11: #{policy_forward.1} parent=1 // pred_check_branch
      %14 = sbr.rel (0) target = $region13
    $region12: #{policy_forward.1} parent=1 // pred_region
      _
    $region13: #{policy_forward.1} parent=1 // pred_fallthru
      _
    %v15 = vld [vmem:[%s0] sm:$0xff]
    %v16 = vld [vmem:[%s1] sm:$0xff]
    %v17 = vld [vmem:[%s1 + $0x8] sm:$0xff]
    %v18 = vld [vmem:[%s2] sm:$0x1]
    %v20 = vlaneseq
    %v21 = vshrl.u32 %v20, 7
    %v22 = vsub.s32 0, %v21
    %v23 = vrot.slane %v18, %v22
    %vm25 = vcmask 130048
    %v27 = vsel %vm25, %v15, 0
    %29 = vmatprep.subr.mxu0 0.0
    %30 = vmatpush1.msra.mxu0 %v16
    %31 = vmatprep.subr.mxu0 0.0
    %32 = vmatpush1.msra.mxu0 %v17
    %33 = vmatprep.subr.mxu0 0.0
    %34 = vmatpush1.msra.mxu0 0.0
    %35 = vmatprep.subr.mxu0 0.0
    %36 = vmatpush1.msra.mxu0 0.0
    %37 = vmatprep.subr.mxu0 0.0
    %38 = vmatpush1.msra.mxu0 0.0
    %39 = vmatprep.subr.mxu0 0.0
    %40 = vmatpush1.msra.mxu0 0.0
    %41 = vmatprep.subr.mxu0 0.0
    %42 = vmatpush1.msra.mxu0 0.0
    %43 = vmatprep.subr.mxu0 0.0
    %44 = vmatpush1.msra.mxu0 0.0
    %45 = vmatprep.subr.mxu0 0.0
    %46 = vmatpush1.msra.mxu0 0.0
    %47 = vmatprep.subr.mxu0 0.0
    %48 = vmatpush1.msra.mxu0 0.0
    %49 = vmatprep.subr.mxu0 0.0
    %50 = vmatpush1.msra.mxu0 0.0
    %51 = vmatprep.subr.mxu0 0.0
    %52 = vmatpush1.msra.mxu0 0.0
    %53 = vmatprep.subr.mxu0 0.0
    %54 = vmatpush1.msra.mxu0 0.0
    %55 = vmatprep.subr.mxu0 0.0
    %56 = vmatpush1.msra.mxu0 0.0
    %57 = vmatprep.subr.mxu0 0.0
    %58 = vmatpush1.msra.mxu0 0.0
    %59 = vmatprep.subr.mxu0 0.0
    %60 = vmatpush1.msra.mxu0 0.0
    %61 = vmatprep.subr.mxu0 0.0
    %62 = vmatpush1.msra.mxu0 0.0
    %63 = vmatprep.subr.mxu0 0.0
    %64 = vmatpush1.msra.mxu0 0.0
    %65 = vmatprep.subr.mxu0 0.0
    %66 = vmatpush1.msra.mxu0 0.0
    %67 = vmatprep.subr.mxu0 0.0
    %68 = vmatpush1.msra.mxu0 0.0
    %69 = vmatprep.subr.mxu0 0.0
    %70 = vmatpush1.msra.mxu0 0.0
    %71 = vmatprep.subr.mxu0 0.0
    %72 = vmatpush1.msra.mxu0 0.0
    %73 = vmatprep.subr.mxu0 0.0
    %74 = vmatpush1.msra.mxu0 0.0
    %75 = vmatprep.subr.mxu0 0.0
    %76 = vmatpush1.msra.mxu0 0.0
    %77 = vmatprep.subr.mxu0 0.0
    %78 = vmatpush1.msra.mxu0 0.0
    %79 = vmatprep.subr.mxu0 0.0
    %80 = vmatpush1.msra.mxu0 0.0
    %81 = vmatprep.subr.mxu0 0.0
    %82 = vmatpush1.msra.mxu0 0.0
    %83 = vmatprep.subr.mxu0 0.0
    %84 = vmatpush1.msra.mxu0 0.0
    %85 = vmatprep.subr.mxu0 0.0
    %86 = vmatpush1.msra.mxu0 0.0
    %87 = vmatprep.subr.mxu0 0.0
    %88 = vmatpush1.msra.mxu0 0.0
    %89 = vmatprep.subr.mxu0 0.0
    %90 = vmatpush1.msra.mxu0 0.0
    %91 = vmatprep.subr.mxu0 0.0
    %92 = vmatpush1.msra.mxu0 0.0
    %93 = vmatprep.mubr.f32.mxu0 0.0
    %94 = vmatmul.mubr.f32.gmra.mrb[0].mxu0 %v27
    %v95 = vpop.f32.mrb[0].mxu0
    %v96 = vadd.f32 %v23, %v95
    %v97 = vpop.f32.mrb[0].mxu0
    %98 = vdwg.mxu0
    %vm99 = vcmask 48128
    %100 = vst.msk [vmem:[#allocation2] sm:$0xff] %vm99, %v96
    // Predicated region
    $region14: #{policy_forward.1} parent=1 // pred_check
      _
    $region15: #{policy_forward.1} parent=1 // pred_check_branch
      %102 = sbr.rel (0) target = $region17
    $region16: #{policy_forward.1} parent=1 // pred_region
      %s104 = ssub.s32 128, 128
      %105 = vsyncadd [#allocation3], %s104
      %s107 = sshll.u32 [#allocation2], 4
      %s108 = int_to_ptr.vmem [resolvable:$true] %s107
      %110 = dma.vmem_to_hbm [thread:$0]  %s108, 128, %s3, [#allocation3]
    $region17: #{policy_forward.1} parent=1 // pred_fallthru
      _
    // Predicated region
    $region18: #{policy_forward.1} parent=1 // pred_check
      _
    $region19: #{policy_forward.1} parent=1 // pred_check_branch
      %112 = sbr.rel (0) target = $region21
    $region20: #{policy_forward.1} parent=1 // pred_region
      %113 = dma.done [#allocation3], 128
    $region21: #{policy_forward.1} parent=1 // pred_fallthru
      _
    %114 = vsyncpa [#allocation3], 1

</llo_original>
